<compile_context>
chip_gen: v5e
topology: v5e:2x2
jax: 0.10.0
libtpu: 0.0.40
codegen_flags: <defaults>
</compile_context>

<pallas_src>
import functools

import jax
import jax.numpy as jnp
from jax import lax
from jax.experimental import pallas as pl
from jax.experimental.pallas import tpu as pltpu


# ----------------------------- Pallas kernel ------------------------------ #
def _spconv_kernel(x_ref, w_ref, b_ref, o_ref, *, cout, cin, kh, kw, hout, wf, r):
    """Fused valid-conv + bias + sub-pixel interleave for one batch element.

    x_ref: (Cin, H, W*r)        column-repeated input (W*r on lanes)
    w_ref: (Cout, Cin*kh*kw, W'*r)  per-lane periodic conv weights
    b_ref: (Cout, W'*r)             per-lane periodic bias
    o_ref: (Cout, H', W'*r)         output already in final sub-pixel layout
    """
    # Hoist the Cin*kh*kw shifted input slices (cheap VMEM loads) out of the
    # output-channel loop; each is a static (sublane, lane) slice.
    taps = []
    for ci in range(cin):
        for ki in range(kh):
            for kj in range(kw):
                taps.append(x_ref[ci, ki:ki + hout, kj * r: kj * r + wf])

    for c in range(cout):
        acc = jnp.zeros((hout, wf), jnp.float32)
        for t, xs in enumerate(taps):
            # (H', Wf) * (1, Wf) broadcast FMA on the VPU; the per-lane weight
            # vector already encodes which of the r sub-pixel filters each
            # output column belongs to.
            acc = acc + xs.astype(jnp.float32) * w_ref[c, t:t + 1, :]
        o_ref[c, :, :] = (acc + b_ref[c:c + 1, :]).astype(o_ref.dtype)


def _spconv_forward(xe, wlanes, blanes, *, cout, cin, kh, kw, hout, wf, r):
    """xe: (B, Cin, H, W*r), wlanes: (Cout, K, Wf), blanes: (Cout, Wf)."""
    B, _, H, Wr = xe.shape
    K = cin * kh * kw
    kernel = functools.partial(
        _spconv_kernel, cout=cout, cin=cin, kh=kh, kw=kw, hout=hout, wf=wf, r=r)

    return pl.pallas_call(
        kernel,
        out_shape=jax.ShapeDtypeStruct((B, cout, hout, wf), xe.dtype),
        grid_spec=pltpu.PrefetchScalarGridSpec(
            num_scalar_prefetch=0,
            grid=(B,),
            in_specs=[
                # One whole (Cin, H, W*r) image per grid step (batch squeezed).
                pl.BlockSpec((None, cin, H, Wr), lambda b: (b, 0, 0, 0)),
                # Small weight / bias lane-vectors, resident every step.
                pl.BlockSpec((cout, K, wf), lambda b: (0, 0, 0)),
                pl.BlockSpec((cout, wf), lambda b: (0, 0)),
            ],
            out_specs=pl.BlockSpec((None, cout, hout, wf), lambda b: (b, 0, 0, 0)),
        ),
        compiler_params=pltpu.CompilerParams(
            dimension_semantics=("parallel",)),
    )(xe, wlanes, blanes)


# --------------------------- Module equivalent ----------------------------- #
class SPConvTranspose2dPallas:
    """JAX/Pallas equivalent of dpt_fsnet SPConvTranspose2d."""

    def __init__(self, in_channels, out_channels, kernel_size, r=1, key=None):
        self.in_channels = in_channels
        self.out_channels = out_channels
        self.kernel_size = (kernel_size if isinstance(kernel_size, tuple)
                            else (kernel_size, kernel_size))
        self.r = r
        kh, kw = self.kernel_size
        fan_in = in_channels * kh * kw
        bound = 1.0 / (fan_in ** 0.5)
        if key is None:
            key = jax.random.PRNGKey(0)
        kw_key, kb_key = jax.random.split(key)
        # Deterministic init mirroring nn.Conv2d default U(-1/sqrt(fan_in), +...)
        self.weight = jax.random.uniform(
            kw_key, (out_channels * r, in_channels, kh, kw),
            minval=-bound, maxval=bound, dtype=jnp.float32)
        self.bias = jax.random.uniform(
            kb_key, (out_channels * r,),
            minval=-bound, maxval=bound, dtype=jnp.float32)

    def __call__(self, x):
        # x: (B, Cin, H, W)  NCHW, float32
        B, Cin, H, W = x.shape
        kh, kw = self.kernel_size
        Hout, Wout = H - kh + 1, W - kw + 1
        Cout, r = self.out_channels, self.r
        K = Cin * kh * kw
        Wf = Wout * r

        # --- r-fold column repeat of the input (xe[..., w*r + j] = x[..., w]).
        # Cheap broadcast + contiguous trailing reshape; replaces the old
        # kh*kw-times im2col blow-up + jnp.pad.
        xe = jnp.broadcast_to(x[..., None], (B, Cin, H, W, r)).reshape(
            B, Cin, H, W * r)

        # --- Per-lane periodic weight/bias vectors (tiny; period r on lanes).
        # Conv channel n = j*Cout + c  ->  wlanes[c, (ci,ki,kj), w*r + j] = W[n,ci,ki,kj]
        wperm = self.weight.reshape(r, Cout, Cin, kh, kw)
        wperm = jnp.transpose(wperm, (1, 2, 3, 4, 0))                 # (Cout,Cin,kh,kw,r)
        wlanes = jnp.broadcast_to(
            wperm[:, :, :, :, None, :],
            (Cout, Cin, kh, kw, Wout, r)).reshape(Cout, K, Wf)
        bperm = jnp.transpose(self.bias.reshape(r, Cout), (1, 0))     # (Cout, r)
        blanes = jnp.broadcast_to(
            bperm[:, None, :], (Cout, Wout, r)).reshape(Cout, Wf)

        # --- Fused conv + bias + sub-pixel rearrangement in the Pallas kernel.
        out = _spconv_forward(xe, wlanes, blanes, cout=Cout, cin=Cin,
                              kh=kh, kw=kw, hout=Hout, wf=Wf, r=r)
        return out                                                     # (B,Cout,H',W'*r)


# ------------------------------ Reference ---------------------------------- #
def _reference(module, x):
    """Pure-JAX reference using lax conv, mirroring the PyTorch forward."""
    out = lax.conv_general_dilated(
        x, module.weight, window_strides=(1, 1), padding="VALID",
        dimension_numbers=("NCHW", "OIHW", "NCHW"))
    out = out + module.bias[None, :, None, None]
    B, nch, H, W = out.shape
    r, Cout = module.r, module.out_channels
    out = out.reshape(B, r, Cout, H, W)
    out = jnp.transpose(out, (0, 2, 3, 4, 1))
    return out.reshape(B, Cout, H, W * r)


if __name__ == "__main__":
    key = jax.random.PRNGKey(0)
    xkey, pkey = jax.random.split(key)

    B, Cin, H, W = 2, 4, 16, 16
    Cout, r = 4, 2
    kernel_size = (1, 3)   # typical usage in dpt_fsnet (frequency-axis kernel)

    x = jax.random.normal(xkey, (B, Cin, H, W), dtype=jnp.float32)

    module = SPConvTranspose2dPallas(Cin, Cout, kernel_size, r=r, key=pkey)

    out = module(x)
    out = jax.block_until_ready(out)

    ref = jax.block_until_ready(_reference(module, x))

    assert out.shape == (B, Cout, H - kernel_size[0] + 1,
                         (W - kernel_size[1] + 1) * r), out.shape
    assert jnp.allclose(out, ref, atol=1e-4, rtol=1e-4), float(
        jnp.max(jnp.abs(out - ref)))

    print("KERNEL_OK")
</pallas_src>

<mosaic_0001>
module attributes {stable_mosaic.version = 11 : i64} {
  func.func @_spconv_kernel(%arg0: i32, %arg1: memref<1x4x16x32xf32, #tpu.memory_space<vmem>>, %arg2: memref<4x12x28xf32, #tpu.memory_space<vmem>>, %arg3: memref<4x28xf32, #tpu.memory_space<vmem>>, %arg4: memref<1x4x16x28xf32, #tpu.memory_space<vmem>>) attributes {dimension_semantics = [#tpu.dimension_semantics<parallel>], iteration_bounds = array<i64: 2>, scalar_prefetch = 0 : i64, scratch_operands = 0 : i64, tpu.core_type = #tpu.core_type<tc>, window_params = [{transform_indices = @transform_0, window_bounds = array<i64: 1, 4, 16, 32>}, {pipeline_mode = #tpu.pipeline_mode<synchronous>, transform_indices = @transform_1, window_bounds = array<i64: 4, 12, 28>}, {pipeline_mode = #tpu.pipeline_mode<synchronous>, transform_indices = @transform_2, window_bounds = array<i64: 4, 28>}, {transform_indices = @transform_3, window_bounds = array<i64: 1, 4, 16, 28>}]} {
    %c0 = arith.constant 0 : index
    %c0_0 = arith.constant 0 : index
    %c0_1 = arith.constant 0 : index
    %c0_2 = arith.constant 0 : index
    %0 = vector.load %arg1[%c0, %c0_0, %c0_1, %c0_2] : memref<1x4x16x32xf32, #tpu.memory_space<vmem>>, vector<1x1x16x28xf32>
    %1 = vector.shape_cast %0 : vector<1x1x16x28xf32> to vector<16x28xf32>
    %c0_3 = arith.constant 0 : index
    %c0_4 = arith.constant 0 : index
    %c0_5 = arith.constant 0 : index
    %c2 = arith.constant 2 : index
    %2 = vector.load %arg1[%c0_3, %c0_4, %c0_5, %c2] : memref<1x4x16x32xf32, #tpu.memory_space<vmem>>, vector<1x1x16x28xf32>
    %3 = vector.shape_cast %2 : vector<1x1x16x28xf32> to vector<16x28xf32>
    %c0_6 = arith.constant 0 : index
    %c0_7 = arith.constant 0 : index
    %c0_8 = arith.constant 0 : index
    %c4 = arith.constant 4 : index
    %4 = vector.load %arg1[%c0_6, %c0_7, %c0_8, %c4] : memref<1x4x16x32xf32, #tpu.memory_space<vmem>>, vector<1x1x16x28xf32>
    %5 = vector.shape_cast %4 : vector<1x1x16x28xf32> to vector<16x28xf32>
    %c0_9 = arith.constant 0 : index
    %c1 = arith.constant 1 : index
    %c0_10 = arith.constant 0 : index
    %c0_11 = arith.constant 0 : index
    %6 = vector.load %arg1[%c0_9, %c1, %c0_10, %c0_11] : memref<1x4x16x32xf32, #tpu.memory_space<vmem>>, vector<1x1x16x28xf32>
    %7 = vector.shape_cast %6 : vector<1x1x16x28xf32> to vector<16x28xf32>
    %c0_12 = arith.constant 0 : index
    %c1_13 = arith.constant 1 : index
    %c0_14 = arith.constant 0 : index
    %c2_15 = arith.constant 2 : index
    %8 = vector.load %arg1[%c0_12, %c1_13, %c0_14, %c2_15] : memref<1x4x16x32xf32, #tpu.memory_space<vmem>>, vector<1x1x16x28xf32>
    %9 = vector.shape_cast %8 : vector<1x1x16x28xf32> to vector<16x28xf32>
    %c0_16 = arith.constant 0 : index
    %c1_17 = arith.constant 1 : index
    %c0_18 = arith.constant 0 : index
    %c4_19 = arith.constant 4 : index
    %10 = vector.load %arg1[%c0_16, %c1_17, %c0_18, %c4_19] : memref<1x4x16x32xf32, #tpu.memory_space<vmem>>, vector<1x1x16x28xf32>
    %11 = vector.shape_cast %10 : vector<1x1x16x28xf32> to vector<16x28xf32>
    %c0_20 = arith.constant 0 : index
    %c2_21 = arith.constant 2 : index
    %c0_22 = arith.constant 0 : index
    %c0_23 = arith.constant 0 : index
    %12 = vector.load %arg1[%c0_20, %c2_21, %c0_22, %c0_23] : memref<1x4x16x32xf32, #tpu.memory_space<vmem>>, vector<1x1x16x28xf32>
    %13 = vector.shape_cast %12 : vector<1x1x16x28xf32> to vector<16x28xf32>
    %c0_24 = arith.constant 0 : index
    %c2_25 = arith.constant 2 : index
    %c0_26 = arith.constant 0 : index
    %c2_27 = arith.constant 2 : index
    %14 = vector.load %arg1[%c0_24, %c2_25, %c0_26, %c2_27] : memref<1x4x16x32xf32, #tpu.memory_space<vmem>>, vector<1x1x16x28xf32>
    %15 = vector.shape_cast %14 : vector<1x1x16x28xf32> to vector<16x28xf32>
    %c0_28 = arith.constant 0 : index
    %c2_29 = arith.constant 2 : index
    %c0_30 = arith.constant 0 : index
    %c4_31 = arith.constant 4 : index
    %16 = vector.load %arg1[%c0_28, %c2_29, %c0_30, %c4_31] : memref<1x4x16x32xf32, #tpu.memory_space<vmem>>, vector<1x1x16x28xf32>
    %17 = vector.shape_cast %16 : vector<1x1x16x28xf32> to vector<16x28xf32>
    %c0_32 = arith.constant 0 : index
    %c3 = arith.constant 3 : index
    %c0_33 = arith.constant 0 : index
    %c0_34 = arith.constant 0 : index
    %18 = vector.load %arg1[%c0_32, %c3, %c0_33, %c0_34] : memref<1x4x16x32xf32, #tpu.memory_space<vmem>>, vector<1x1x16x28xf32>
    %19 = vector.shape_cast %18 : vector<1x1x16x28xf32> to vector<16x28xf32>
    %c0_35 = arith.constant 0 : index
    %c3_36 = arith.constant 3 : index
    %c0_37 = arith.constant 0 : index
    %c2_38 = arith.constant 2 : index
    %20 = vector.load %arg1[%c0_35, %c3_36, %c0_37, %c2_38] : memref<1x4x16x32xf32, #tpu.memory_space<vmem>>, vector<1x1x16x28xf32>
    %21 = vector.shape_cast %20 : vector<1x1x16x28xf32> to vector<16x28xf32>
    %c0_39 = arith.constant 0 : index
    %c3_40 = arith.constant 3 : index
    %c0_41 = arith.constant 0 : index
    %c4_42 = arith.constant 4 : index
    %22 = vector.load %arg1[%c0_39, %c3_40, %c0_41, %c4_42] : memref<1x4x16x32xf32, #tpu.memory_space<vmem>>, vector<1x1x16x28xf32>
    %23 = vector.shape_cast %22 : vector<1x1x16x28xf32> to vector<16x28xf32>
    %cst = arith.constant 0.000000e+00 : f32
    %24 = vector.broadcast %cst : f32 to vector<16x28xf32>
    %c0_43 = arith.constant 0 : index
    %c0_44 = arith.constant 0 : index
    %c0_45 = arith.constant 0 : index
    %25 = vector.load %arg2[%c0_43, %c0_44, %c0_45] : memref<4x12x28xf32, #tpu.memory_space<vmem>>, vector<1x1x28xf32>
    %26 = vector.shape_cast %25 : vector<1x1x28xf32> to vector<1x28xf32>
    %27 = vector.broadcast %26 : vector<1x28xf32> to vector<16x28xf32>
    %28 = arith.mulf %1, %27 : vector<16x28xf32>
    %29 = arith.addf %24, %28 : vector<16x28xf32>
    %c0_46 = arith.constant 0 : index
    %c1_47 = arith.constant 1 : index
    %c0_48 = arith.constant 0 : index
    %30 = vector.load %arg2[%c0_46, %c1_47, %c0_48] : memref<4x12x28xf32, #tpu.memory_space<vmem>>, vector<1x1x28xf32>
    %31 = vector.shape_cast %30 : vector<1x1x28xf32> to vector<1x28xf32>
    %32 = vector.broadcast %31 : vector<1x28xf32> to vector<16x28xf32>
    %33 = arith.mulf %3, %32 : vector<16x28xf32>
    %34 = arith.addf %29, %33 : vector<16x28xf32>
    %c0_49 = arith.constant 0 : index
    %c2_50 = arith.constant 2 : index
    %c0_51 = arith.constant 0 : index
    %35 = vector.load %arg2[%c0_49, %c2_50, %c0_51] : memref<4x12x28xf32, #tpu.memory_space<vmem>>, vector<1x1x28xf32>
    %36 = vector.shape_cast %35 : vector<1x1x28xf32> to vector<1x28xf32>
    %37 = vector.broadcast %36 : vector<1x28xf32> to vector<16x28xf32>
    %38 = arith.mulf %5, %37 : vector<16x28xf32>
    %39 = arith.addf %34, %38 : vector<16x28xf32>
    %c0_52 = arith.constant 0 : index
    %c3_53 = arith.constant 3 : index
    %c0_54 = arith.constant 0 : index
    %40 = vector.load %arg2[%c0_52, %c3_53, %c0_54] : memref<4x12x28xf32, #tpu.memory_space<vmem>>, vector<1x1x28xf32>
    %41 = vector.shape_cast %40 : vector<1x1x28xf32> to vector<1x28xf32>
    %42 = vector.broadcast %41 : vector<1x28xf32> to vector<16x28xf32>
    %43 = arith.mulf %7, %42 : vector<16x28xf32>
    %44 = arith.addf %39, %43 : vector<16x28xf32>
    %c0_55 = arith.constant 0 : index
    %c4_56 = arith.constant 4 : index
    %c0_57 = arith.constant 0 : index
    %45 = vector.load %arg2[%c0_55, %c4_56, %c0_57] : memref<4x12x28xf32, #tpu.memory_space<vmem>>, vector<1x1x28xf32>
    %46 = vector.shape_cast %45 : vector<1x1x28xf32> to vector<1x28xf32>
    %47 = vector.broadcast %46 : vector<1x28xf32> to vector<16x28xf32>
    %48 = arith.mulf %9, %47 : vector<16x28xf32>
    %49 = arith.addf %44, %48 : vector<16x28xf32>
    %c0_58 = arith.constant 0 : index
    %c5 = arith.constant 5 : index
    %c0_59 = arith.constant 0 : index
    %50 = vector.load %arg2[%c0_58, %c5, %c0_59] : memref<4x12x28xf32, #tpu.memory_space<vmem>>, vector<1x1x28xf32>
    %51 = vector.shape_cast %50 : vector<1x1x28xf32> to vector<1x28xf32>
    %52 = vector.broadcast %51 : vector<1x28xf32> to vector<16x28xf32>
    %53 = arith.mulf %11, %52 : vector<16x28xf32>
    %54 = arith.addf %49, %53 : vector<16x28xf32>
    %c0_60 = arith.constant 0 : index
    %c6 = arith.constant 6 : index
    %c0_61 = arith.constant 0 : index
    %55 = vector.load %arg2[%c0_60, %c6, %c0_61] : memref<4x12x28xf32, #tpu.memory_space<vmem>>, vector<1x1x28xf32>
    %56 = vector.shape_cast %55 : vector<1x1x28xf32> to vector<1x28xf32>
    %57 = vector.broadcast %56 : vector<1x28xf32> to vector<16x28xf32>
    %58 = arith.mulf %13, %57 : vector<16x28xf32>
    %59 = arith.addf %54, %58 : vector<16x28xf32>
    %c0_62 = arith.constant 0 : index
    %c7 = arith.constant 7 : index
    %c0_63 = arith.constant 0 : index
    %60 = vector.load %arg2[%c0_62, %c7, %c0_63] : memref<4x12x28xf32, #tpu.memory_space<vmem>>, vector<1x1x28xf32>
    %61 = vector.shape_cast %60 : vector<1x1x28xf32> to vector<1x28xf32>
    %62 = vector.broadcast %61 : vector<1x28xf32> to vector<16x28xf32>
    %63 = arith.mulf %15, %62 : vector<16x28xf32>
    %64 = arith.addf %59, %63 : vector<16x28xf32>
    %c0_64 = arith.constant 0 : index
    %c8 = arith.constant 8 : index
    %c0_65 = arith.constant 0 : index
    %65 = vector.load %arg2[%c0_64, %c8, %c0_65] : memref<4x12x28xf32, #tpu.memory_space<vmem>>, vector<1x1x28xf32>
    %66 = vector.shape_cast %65 : vector<1x1x28xf32> to vector<1x28xf32>
    %67 = vector.broadcast %66 : vector<1x28xf32> to vector<16x28xf32>
    %68 = arith.mulf %17, %67 : vector<16x28xf32>
    %69 = arith.addf %64, %68 : vector<16x28xf32>
    %c0_66 = arith.constant 0 : index
    %c9 = arith.constant 9 : index
    %c0_67 = arith.constant 0 : index
    %70 = vector.load %arg2[%c0_66, %c9, %c0_67] : memref<4x12x28xf32, #tpu.memory_space<vmem>>, vector<1x1x28xf32>
    %71 = vector.shape_cast %70 : vector<1x1x28xf32> to vector<1x28xf32>
    %72 = vector.broadcast %71 : vector<1x28xf32> to vector<16x28xf32>
    %73 = arith.mulf %19, %72 : vector<16x28xf32>
    %74 = arith.addf %69, %73 : vector<16x28xf32>
    %c0_68 = arith.constant 0 : index
    %c10 = arith.constant 10 : index
    %c0_69 = arith.constant 0 : index
    %75 = vector.load %arg2[%c0_68, %c10, %c0_69] : memref<4x12x28xf32, #tpu.memory_space<vmem>>, vector<1x1x28xf32>
    %76 = vector.shape_cast %75 : vector<1x1x28xf32> to vector<1x28xf32>
    %77 = vector.broadcast %76 : vector<1x28xf32> to vector<16x28xf32>
    %78 = arith.mulf %21, %77 : vector<16x28xf32>
    %79 = arith.addf %74, %78 : vector<16x28xf32>
    %c0_70 = arith.constant 0 : index
    %c11 = arith.constant 11 : index
    %c0_71 = arith.constant 0 : index
    %80 = vector.load %arg2[%c0_70, %c11, %c0_71] : memref<4x12x28xf32, #tpu.memory_space<vmem>>, vector<1x1x28xf32>
    %81 = vector.shape_cast %80 : vector<1x1x28xf32> to vector<1x28xf32>
    %82 = vector.broadcast %81 : vector<1x28xf32> to vector<16x28xf32>
    %83 = arith.mulf %23, %82 : vector<16x28xf32>
    %84 = arith.addf %79, %83 : vector<16x28xf32>
    %c0_72 = arith.constant 0 : index
    %c0_73 = arith.constant 0 : index
    %85 = vector.load %arg3[%c0_72, %c0_73] : memref<4x28xf32, #tpu.memory_space<vmem>>, vector<1x28xf32>
    %86 = vector.broadcast %85 : vector<1x28xf32> to vector<16x28xf32>
    %87 = arith.addf %84, %86 : vector<16x28xf32>
    %c0_74 = arith.constant 0 : index
    %c0_75 = arith.constant 0 : index
    %c0_76 = arith.constant 0 : index
    %c0_77 = arith.constant 0 : index
    %88 = vector.load %arg4[%c0_74, %c0_75, %c0_76, %c0_77] : memref<1x4x16x28xf32, #tpu.memory_space<vmem>>, vector<1x1x16x28xf32>
    %89 = vector.shape_cast %88 : vector<1x1x16x28xf32> to vector<16x28xf32>
    %90 = vector.shape_cast %87 : vector<16x28xf32> to vector<1x1x16x28xf32>
    tpu.vector_store %arg4[%c0_74, %c0_75, %c0_76, %c0_77], %90 {strides = array<i32>} : memref<1x4x16x28xf32, #tpu.memory_space<vmem>>, vector<1x1x16x28xf32>,
    %cst_78 = arith.constant 0.000000e+00 : f32
    %91 = vector.broadcast %cst_78 : f32 to vector<16x28xf32>
    %c1_79 = arith.constant 1 : index
    %c0_80 = arith.constant 0 : index
    %c0_81 = arith.constant 0 : index
    %92 = vector.load %arg2[%c1_79, %c0_80, %c0_81] : memref<4x12x28xf32, #tpu.memory_space<vmem>>, vector<1x1x28xf32>
    %93 = vector.shape_cast %92 : vector<1x1x28xf32> to vector<1x28xf32>
    %94 = vector.broadcast %93 : vector<1x28xf32> to vector<16x28xf32>
    %95 = arith.mulf %1, %94 : vector<16x28xf32>
    %96 = arith.addf %91, %95 : vector<16x28xf32>
    %c1_82 = arith.constant 1 : index
    %c1_83 = arith.constant 1 : index
    %c0_84 = arith.constant 0 : index
    %97 = vector.load %arg2[%c1_82, %c1_83, %c0_84] : memref<4x12x28xf32, #tpu.memory_space<vmem>>, vector<1x1x28xf32>
    %98 = vector.shape_cast %97 : vector<1x1x28xf32> to vector<1x28xf32>
    %99 = vector.broadcast %98 : vector<1x28xf32> to vector<16x28xf32>
    %100 = arith.mulf %3, %99 : vector<16x28xf32>
    %101 = arith.addf %96, %100 : vector<16x28xf32>
    %c1_85 = arith.constant 1 : index
    %c2_86 = arith.constant 2 : index
    %c0_87 = arith.constant 0 : index
    %102 = vector.load %arg2[%c1_85, %c2_86, %c0_87] : memref<4x12x28xf32, #tpu.memory_space<vmem>>, vector<1x1x28xf32>
    %103 = vector.shape_cast %102 : vector<1x1x28xf32> to vector<1x28xf32>
    %104 = vector.broadcast %103 : vector<1x28xf32> to vector<16x28xf32>
    %105 = arith.mulf %5, %104 : vector<16x28xf32>
    %106 = arith.addf %101, %105 : vector<16x28xf32>
    %c1_88 = arith.constant 1 : index
    %c3_89 = arith.constant 3 : index
    %c0_90 = arith.constant 0 : index
    %107 = vector.load %arg2[%c1_88, %c3_89, %c0_90] : memref<4x12x28xf32, #tpu.memory_space<vmem>>, vector<1x1x28xf32>
    %108 = vector.shape_cast %107 : vector<1x1x28xf32> to vector<1x28xf32>
    %109 = vector.broadcast %108 : vector<1x28xf32> to vector<16x28xf32>
    %110 = arith.mulf %7, %109 : vector<16x28xf32>
    %111 = arith.addf %106, %110 : vector<16x28xf32>
    %c1_91 = arith.constant 1 : index
    %c4_92 = arith.constant 4 : index
    %c0_93 = arith.constant 0 : index
    %112 = vector.load %arg2[%c1_91, %c4_92, %c0_93] : memref<4x12x28xf32, #tpu.memory_space<vmem>>, vector<1x1x28xf32>
    %113 = vector.shape_cast %112 : vector<1x1x28xf32> to vector<1x28xf32>
    %114 = vector.broadcast %113 : vector<1x28xf32> to vector<16x28xf32>
    %115 = arith.mulf %9, %114 : vector<16x28xf32>
    %116 = arith.addf %111, %115 : vector<16x28xf32>
    %c1_94 = arith.constant 1 : index
    %c5_95 = arith.constant 5 : index
    %c0_96 = arith.constant 0 : index
    %117 = vector.load %arg2[%c1_94, %c5_95, %c0_96] : memref<4x12x28xf32, #tpu.memory_space<vmem>>, vector<1x1x28xf32>
    %118 = vector.shape_cast %117 : vector<1x1x28xf32> to vector<1x28xf32>
    %119 = vector.broadcast %118 : vector<1x28xf32> to vector<16x28xf32>
    %120 = arith.mulf %11, %119 : vector<16x28xf32>
    %121 = arith.addf %116, %120 : vector<16x28xf32>
    %c1_97 = arith.constant 1 : index
    %c6_98 = arith.constant 6 : index
    %c0_99 = arith.constant 0 : index
    %122 = vector.load %arg2[%c1_97, %c6_98, %c0_99] : memref<4x12x28xf32, #tpu.memory_space<vmem>>, vector<1x1x28xf32>
    %123 = vector.shape_cast %122 : vector<1x1x28xf32> to vector<1x28xf32>
    %124 = vector.broadcast %123 : vector<1x28xf32> to vector<16x28xf32>
    %125 = arith.mulf %13, %124 : vector<16x28xf32>
    %126 = arith.addf %121, %125 : vector<16x28xf32>
    %c1_100 = arith.constant 1 : index
    %c7_101 = arith.constant 7 : index
    %c0_102 = arith.constant 0 : index
    %127 = vector.load %arg2[%c1_100, %c7_101, %c0_102] : memref<4x12x28xf32, #tpu.memory_space<vmem>>, vector<1x1x28xf32>
    %128 = vector.shape_cast %127 : vector<1x1x28xf32> to vector<1x28xf32>
    %129 = vector.broadcast %128 : vector<1x28xf32> to vector<16x28xf32>
    %130 = arith.mulf %15, %129 : vector<16x28xf32>
    %131 = arith.addf %126, %130 : vector<16x28xf32>
    %c1_103 = arith.constant 1 : index
    %c8_104 = arith.constant 8 : index
    %c0_105 = arith.constant 0 : index
    %132 = vector.load %arg2[%c1_103, %c8_104, %c0_105] : memref<4x12x28xf32, #tpu.memory_space<vmem>>, vector<1x1x28xf32>
    %133 = vector.shape_cast %132 : vector<1x1x28xf32> to vector<1x28xf32>
    %134 = vector.broadcast %133 : vector<1x28xf32> to vector<16x28xf32>
    %135 = arith.mulf %17, %134 : vector<16x28xf32>
    %136 = arith.addf %131, %135 : vector<16x28xf32>
    %c1_106 = arith.constant 1 : index
    %c9_107 = arith.constant 9 : index
    %c0_108 = arith.constant 0 : index
    %137 = vector.load %arg2[%c1_106, %c9_107, %c0_108] : memref<4x12x28xf32, #tpu.memory_space<vmem>>, vector<1x1x28xf32>
    %138 = vector.shape_cast %137 : vector<1x1x28xf32> to vector<1x28xf32>
    %139 = vector.broadcast %138 : vector<1x28xf32> to vector<16x28xf32>
    %140 = arith.mulf %19, %139 : vector<16x28xf32>
    %141 = arith.addf %136, %140 : vector<16x28xf32>
    %c1_109 = arith.constant 1 : index
    %c10_110 = arith.constant 10 : index
    %c0_111 = arith.constant 0 : index
    %142 = vector.load %arg2[%c1_109, %c10_110, %c0_111] : memref<4x12x28xf32, #tpu.memory_space<vmem>>, vector<1x1x28xf32>
    %143 = vector.shape_cast %142 : vector<1x1x28xf32> to vector<1x28xf32>
    %144 = vector.broadcast %143 : vector<1x28xf32> to vector<16x28xf32>
    %145 = arith.mulf %21, %144 : vector<16x28xf32>
    %146 = arith.addf %141, %145 : vector<16x28xf32>
    %c1_112 = arith.constant 1 : index
    %c11_113 = arith.constant 11 : index
    %c0_114 = arith.constant 0 : index
    %147 = vector.load %arg2[%c1_112, %c11_113, %c0_114] : memref<4x12x28xf32, #tpu.memory_space<vmem>>, vector<1x1x28xf32>
    %148 = vector.shape_cast %147 : vector<1x1x28xf32> to vector<1x28xf32>
    %149 = vector.broadcast %148 : vector<1x28xf32> to vector<16x28xf32>
    %150 = arith.mulf %23, %149 : vector<16x28xf32>
    %151 = arith.addf %146, %150 : vector<16x28xf32>
    %c1_115 = arith.constant 1 : index
    %c0_116 = arith.constant 0 : index
    %152 = vector.load %arg3[%c1_115, %c0_116] : memref<4x28xf32, #tpu.memory_space<vmem>>, vector<1x28xf32>
    %153 = vector.broadcast %152 : vector<1x28xf32> to vector<16x28xf32>
    %154 = arith.addf %151, %153 : vector<16x28xf32>
    %c0_117 = arith.constant 0 : index
    %c1_118 = arith.constant 1 : index
    %c0_119 = arith.constant 0 : index
    %c0_120 = arith.constant 0 : index
    %155 = vector.load %arg4[%c0_117, %c1_118, %c0_119, %c0_120] : memref<1x4x16x28xf32, #tpu.memory_space<vmem>>, vector<1x1x16x28xf32>
    %156 = vector.shape_cast %155 : vector<1x1x16x28xf32> to vector<16x28xf32>
    %157 = vector.shape_cast %154 : vector<16x28xf32> to vector<1x1x16x28xf32>
    tpu.vector_store %arg4[%c0_117, %c1_118, %c0_119, %c0_120], %157 {strides = array<i32>} : memref<1x4x16x28xf32, #tpu.memory_space<vmem>>, vector<1x1x16x28xf32>,
    %cst_121 = arith.constant 0.000000e+00 : f32
    %158 = vector.broadcast %cst_121 : f32 to vector<16x28xf32>
    %c2_122 = arith.constant 2 : index
    %c0_123 = arith.constant 0 : index
    %c0_124 = arith.constant 0 : index
    %159 = vector.load %arg2[%c2_122, %c0_123, %c0_124] : memref<4x12x28xf32, #tpu.memory_space<vmem>>, vector<1x1x28xf32>
    %160 = vector.shape_cast %159 : vector<1x1x28xf32> to vector<1x28xf32>
    %161 = vector.broadcast %160 : vector<1x28xf32> to vector<16x28xf32>
    %162 = arith.mulf %1, %161 : vector<16x28xf32>
    %163 = arith.addf %158, %162 : vector<16x28xf32>
    %c2_125 = arith.constant 2 : index
    %c1_126 = arith.constant 1 : index
    %c0_127 = arith.constant 0 : index
    %164 = vector.load %arg2[%c2_125, %c1_126, %c0_127] : memref<4x12x28xf32, #tpu.memory_space<vmem>>, vector<1x1x28xf32>
    %165 = vector.shape_cast %164 : vector<1x1x28xf32> to vector<1x28xf32>
    %166 = vector.broadcast %165 : vector<1x28xf32> to vector<16x28xf32>
    %167 = arith.mulf %3, %166 : vector<16x28xf32>
    %168 = arith.addf %163, %167 : vector<16x28xf32>
    %c2_128 = arith.constant 2 : index
    %c2_129 = arith.constant 2 : index
    %c0_130 = arith.constant 0 : index
    %169 = vector.load %arg2[%c2_128, %c2_129, %c0_130] : memref<4x12x28xf32, #tpu.memory_space<vmem>>, vector<1x1x28xf32>
    %170 = vector.shape_cast %169 : vector<1x1x28xf32> to vector<1x28xf32>
    %171 = vector.broadcast %170 : vector<1x28xf32> to vector<16x28xf32>
    %172 = arith.mulf %5, %171 : vector<16x28xf32>
    %173 = arith.addf %168, %172 : vector<16x28xf32>
    %c2_131 = arith.constant 2 : index
    %c3_132 = arith.constant 3 : index
    %c0_133 = arith.constant 0 : index
    %174 = vector.load %arg2[%c2_131, %c3_132, %c0_133] : memref<4x12x28xf32, #tpu.memory_space<vmem>>, vector<1x1x28xf32>
    %175 = vector.shape_cast %174 : vector<1x1x28xf32> to vector<1x28xf32>
    %176 = vector.broadcast %175 : vector<1x28xf32> to vector<16x28xf32>
    %177 = arith.mulf %7, %176 : vector<16x28xf32>
    %178 = arith.addf %173, %177 : vector<16x28xf32>
    %c2_134 = arith.constant 2 : index
    %c4_135 = arith.constant 4 : index
    %c0_136 = arith.constant 0 : index
    %179 = vector.load %arg2[%c2_134, %c4_135, %c0_136] : memref<4x12x28xf32, #tpu.memory_space<vmem>>, vector<1x1x28xf32>
    %180 = vector.shape_cast %179 : vector<1x1x28xf32> to vector<1x28xf32>
    %181 = vector.broadcast %180 : vector<1x28xf32> to vector<16x28xf32>
    %182 = arith.mulf %9, %181 : vector<16x28xf32>
    %183 = arith.addf %178, %182 : vector<16x28xf32>
    %c2_137 = arith.constant 2 : index
    %c5_138 = arith.constant 5 : index
    %c0_139 = arith.constant 0 : index
    %184 = vector.load %arg2[%c2_137, %c5_138, %c0_139] : memref<4x12x28xf32, #tpu.memory_space<vmem>>, vector<1x1x28xf32>
    %185 = vector.shape_cast %184 : vector<1x1x28xf32> to vector<1x28xf32>
    %186 = vector.broadcast %185 : vector<1x28xf32> to vector<16x28xf32>
    %187 = arith.mulf %11, %186 : vector<16x28xf32>
    %188 = arith.addf %183, %187 : vector<16x28xf32>
    %c2_140 = arith.constant 2 : index
    %c6_141 = arith.constant 6 : index
    %c0_142 = arith.constant 0 : index
    %189 = vector.load %arg2[%c2_140, %c6_141, %c0_142] : memref<4x12x28xf32, #tpu.memory_space<vmem>>, vector<1x1x28xf32>
    %190 = vector.shape_cast %189 : vector<1x1x28xf32> to vector<1x28xf32>
    %191 = vector.broadcast %190 : vector<1x28xf32> to vector<16x28xf32>
    %192 = arith.mulf %13, %191 : vector<16x28xf32>
    %193 = arith.addf %188, %192 : vector<16x28xf32>
    %c2_143 = arith.constant 2 : index
    %c7_144 = arith.constant 7 : index
    %c0_145 = arith.constant 0 : index
    %194 = vector.load %arg2[%c2_143, %c7_144, %c0_145] : memref<4x12x28xf32, #tpu.memory_space<vmem>>, vector<1x1x28xf32>
    %195 = vector.shape_cast %194 : vector<1x1x28xf32> to vector<1x28xf32>
    %196 = vector.broadcast %195 : vector<1x28xf32> to vector<16x28xf32>
    %197 = arith.mulf %15, %196 : vector<16x28xf32>
    %198 = arith.addf %193, %197 : vector<16x28xf32>
    %c2_146 = arith.constant 2 : index
    %c8_147 = arith.constant 8 : index
    %c0_148 = arith.constant 0 : index
    %199 = vector.load %arg2[%c2_146, %c8_147, %c0_148] : memref<4x12x28xf32, #tpu.memory_space<vmem>>, vector<1x1x28xf32>
    %200 = vector.shape_cast %199 : vector<1x1x28xf32> to vector<1x28xf32>
    %201 = vector.broadcast %200 : vector<1x28xf32> to vector<16x28xf32>
    %202 = arith.mulf %17, %201 : vector<16x28xf32>
    %203 = arith.addf %198, %202 : vector<16x28xf32>
    %c2_149 = arith.constant 2 : index
    %c9_150 = arith.constant 9 : index
    %c0_151 = arith.constant 0 : index
    %204 = vector.load %arg2[%c2_149, %c9_150, %c0_151] : memref<4x12x28xf32, #tpu.memory_space<vmem>>, vector<1x1x28xf32>
    %205 = vector.shape_cast %204 : vector<1x1x28xf32> to vector<1x28xf32>
    %206 = vector.broadcast %205 : vector<1x28xf32> to vector<16x28xf32>
    %207 = arith.mulf %19, %206 : vector<16x28xf32>
    %208 = arith.addf %203, %207 : vector<16x28xf32>
    %c2_152 = arith.constant 2 : index
    %c10_153 = arith.constant 10 : index
    %c0_154 = arith.constant 0 : index
    %209 = vector.load %arg2[%c2_152, %c10_153, %c0_154] : memref<4x12x28xf32, #tpu.memory_space<vmem>>, vector<1x1x28xf32>
    %210 = vector.shape_cast %209 : vector<1x1x28xf32> to vector<1x28xf32>
    %211 = vector.broadcast %210 : vector<1x28xf32> to vector<16x28xf32>
    %212 = arith.mulf %21, %211 : vector<16x28xf32>
    %213 = arith.addf %208, %212 : vector<16x28xf32>
    %c2_155 = arith.constant 2 : index
    %c11_156 = arith.constant 11 : index
    %c0_157 = arith.constant 0 : index
    %214 = vector.load %arg2[%c2_155, %c11_156, %c0_157] : memref<4x12x28xf32, #tpu.memory_space<vmem>>, vector<1x1x28xf32>
    %215 = vector.shape_cast %214 : vector<1x1x28xf32> to vector<1x28xf32>
    %216 = vector.broadcast %215 : vector<1x28xf32> to vector<16x28xf32>
    %217 = arith.mulf %23, %216 : vector<16x28xf32>
    %218 = arith.addf %213, %217 : vector<16x28xf32>
    %c2_158 = arith.constant 2 : index
    %c0_159 = arith.constant 0 : index
    %219 = vector.load %arg3[%c2_158, %c0_159] : memref<4x28xf32, #tpu.memory_space<vmem>>, vector<1x28xf32>
    %220 = vector.broadcast %219 : vector<1x28xf32> to vector<16x28xf32>
    %221 = arith.addf %218, %220 : vector<16x28xf32>
    %c0_160 = arith.constant 0 : index
    %c2_161 = arith.constant 2 : index
    %c0_162 = arith.constant 0 : index
    %c0_163 = arith.constant 0 : index
    %222 = vector.load %arg4[%c0_160, %c2_161, %c0_162, %c0_163] : memref<1x4x16x28xf32, #tpu.memory_space<vmem>>, vector<1x1x16x28xf32>
    %223 = vector.shape_cast %222 : vector<1x1x16x28xf32> to vector<16x28xf32>
    %224 = vector.shape_cast %221 : vector<16x28xf32> to vector<1x1x16x28xf32>
    tpu.vector_store %arg4[%c0_160, %c2_161, %c0_162, %c0_163], %224 {strides = array<i32>} : memref<1x4x16x28xf32, #tpu.memory_space<vmem>>, vector<1x1x16x28xf32>,
    %cst_164 = arith.constant 0.000000e+00 : f32
    %225 = vector.broadcast %cst_164 : f32 to vector<16x28xf32>
    %c3_165 = arith.constant 3 : index
    %c0_166 = arith.constant 0 : index
    %c0_167 = arith.constant 0 : index
    %226 = vector.load %arg2[%c3_165, %c0_166, %c0_167] : memref<4x12x28xf32, #tpu.memory_space<vmem>>, vector<1x1x28xf32>
    %227 = vector.shape_cast %226 : vector<1x1x28xf32> to vector<1x28xf32>
    %228 = vector.broadcast %227 : vector<1x28xf32> to vector<16x28xf32>
    %229 = arith.mulf %1, %228 : vector<16x28xf32>
    %230 = arith.addf %225, %229 : vector<16x28xf32>
    %c3_168 = arith.constant 3 : index
    %c1_169 = arith.constant 1 : index
    %c0_170 = arith.constant 0 : index
    %231 = vector.load %arg2[%c3_168, %c1_169, %c0_170] : memref<4x12x28xf32, #tpu.memory_space<vmem>>, vector<1x1x28xf32>
    %232 = vector.shape_cast %231 : vector<1x1x28xf32> to vector<1x28xf32>
    %233 = vector.broadcast %232 : vector<1x28xf32> to vector<16x28xf32>
    %234 = arith.mulf %3, %233 : vector<16x28xf32>
    %235 = arith.addf %230, %234 : vector<16x28xf32>
    %c3_171 = arith.constant 3 : index
    %c2_172 = arith.constant 2 : index
    %c0_173 = arith.constant 0 : index
    %236 = vector.load %arg2[%c3_171, %c2_172, %c0_173] : memref<4x12x28xf32, #tpu.memory_space<vmem>>, vector<1x1x28xf32>
    %237 = vector.shape_cast %236 : vector<1x1x28xf32> to vector<1x28xf32>
    %238 = vector.broadcast %237 : vector<1x28xf32> to vector<16x28xf32>
    %239 = arith.mulf %5, %238 : vector<16x28xf32>
    %240 = arith.addf %235, %239 : vector<16x28xf32>
    %c3_174 = arith.constant 3 : index
    %c3_175 = arith.constant 3 : index
    %c0_176 = arith.constant 0 : index
    %241 = vector.load %arg2[%c3_174, %c3_175, %c0_176] : memref<4x12x28xf32, #tpu.memory_space<vmem>>, vector<1x1x28xf32>
    %242 = vector.shape_cast %241 : vector<1x1x28xf32> to vector<1x28xf32>
    %243 = vector.broadcast %242 : vector<1x28xf32> to vector<16x28xf32>
    %244 = arith.mulf %7, %243 : vector<16x28xf32>
    %245 = arith.addf %240, %244 : vector<16x28xf32>
    %c3_177 = arith.constant 3 : index
    %c4_178 = arith.constant 4 : index
    %c0_179 = arith.constant 0 : index
    %246 = vector.load %arg2[%c3_177, %c4_178, %c0_179] : memref<4x12x28xf32, #tpu.memory_space<vmem>>, vector<1x1x28xf32>
    %247 = vector.shape_cast %246 : vector<1x1x28xf32> to vector<1x28xf32>
    %248 = vector.broadcast %247 : vector<1x28xf32> to vector<16x28xf32>
    %249 = arith.mulf %9, %248 : vector<16x28xf32>
    %250 = arith.addf %245, %249 : vector<16x28xf32>
    %c3_180 = arith.constant 3 : index
    %c5_181 = arith.constant 5 : index
    %c0_182 = arith.constant 0 : index
    %251 = vector.load %arg2[%c3_180, %c5_181, %c0_182] : memref<4x12x28xf32, #tpu.memory_space<vmem>>, vector<1x1x28xf32>
    %252 = vector.shape_cast %251 : vector<1x1x28xf32> to vector<1x28xf32>
    %253 = vector.broadcast %252 : vector<1x28xf32> to vector<16x28xf32>
    %254 = arith.mulf %11, %253 : vector<16x28xf32>
    %255 = arith.addf %250, %254 : vector<16x28xf32>
    %c3_183 = arith.constant 3 : index
    %c6_184 = arith.constant 6 : index
    %c0_185 = arith.constant 0 : index
    %256 = vector.load %arg2[%c3_183, %c6_184, %c0_185] : memref<4x12x28xf32, #tpu.memory_space<vmem>>, vector<1x1x28xf32>
    %257 = vector.shape_cast %256 : vector<1x1x28xf32> to vector<1x28xf32>
    %258 = vector.broadcast %257 : vector<1x28xf32> to vector<16x28xf32>
    %259 = arith.mulf %13, %258 : vector<16x28xf32>
    %260 = arith.addf %255, %259 : vector<16x28xf32>
    %c3_186 = arith.constant 3 : index
    %c7_187 = arith.constant 7 : index
    %c0_188 = arith.constant 0 : index
    %261 = vector.load %arg2[%c3_186, %c7_187, %c0_188] : memref<4x12x28xf32, #tpu.memory_space<vmem>>, vector<1x1x28xf32>
    %262 = vector.shape_cast %261 : vector<1x1x28xf32> to vector<1x28xf32>
    %263 = vector.broadcast %262 : vector<1x28xf32> to vector<16x28xf32>
    %264 = arith.mulf %15, %263 : vector<16x28xf32>
    %265 = arith.addf %260, %264 : vector<16x28xf32>
    %c3_189 = arith.constant 3 : index
    %c8_190 = arith.constant 8 : index
    %c0_191 = arith.constant 0 : index
    %266 = vector.load %arg2[%c3_189, %c8_190, %c0_191] : memref<4x12x28xf32, #tpu.memory_space<vmem>>, vector<1x1x28xf32>
    %267 = vector.shape_cast %266 : vector<1x1x28xf32> to vector<1x28xf32>
    %268 = vector.broadcast %267 : vector<1x28xf32> to vector<16x28xf32>
    %269 = arith.mulf %17, %268 : vector<16x28xf32>
    %270 = arith.addf %265, %269 : vector<16x28xf32>
    %c3_192 = arith.constant 3 : index
    %c9_193 = arith.constant 9 : index
    %c0_194 = arith.constant 0 : index
    %271 = vector.load %arg2[%c3_192, %c9_193, %c0_194] : memref<4x12x28xf32, #tpu.memory_space<vmem>>, vector<1x1x28xf32>
    %272 = vector.shape_cast %271 : vector<1x1x28xf32> to vector<1x28xf32>
    %273 = vector.broadcast %272 : vector<1x28xf32> to vector<16x28xf32>
    %274 = arith.mulf %19, %273 : vector<16x28xf32>
    %275 = arith.addf %270, %274 : vector<16x28xf32>
    %c3_195 = arith.constant 3 : index
    %c10_196 = arith.constant 10 : index
    %c0_197 = arith.constant 0 : index
    %276 = vector.load %arg2[%c3_195, %c10_196, %c0_197] : memref<4x12x28xf32, #tpu.memory_space<vmem>>, vector<1x1x28xf32>
    %277 = vector.shape_cast %276 : vector<1x1x28xf32> to vector<1x28xf32>
    %278 = vector.broadcast %277 : vector<1x28xf32> to vector<16x28xf32>
    %279 = arith.mulf %21, %278 : vector<16x28xf32>
    %280 = arith.addf %275, %279 : vector<16x28xf32>
    %c3_198 = arith.constant 3 : index
    %c11_199 = arith.constant 11 : index
    %c0_200 = arith.constant 0 : index
    %281 = vector.load %arg2[%c3_198, %c11_199, %c0_200] : memref<4x12x28xf32, #tpu.memory_space<vmem>>, vector<1x1x28xf32>
    %282 = vector.shape_cast %281 : vector<1x1x28xf32> to vector<1x28xf32>
    %283 = vector.broadcast %282 : vector<1x28xf32> to vector<16x28xf32>
    %284 = arith.mulf %23, %283 : vector<16x28xf32>
    %285 = arith.addf %280, %284 : vector<16x28xf32>
    %c3_201 = arith.constant 3 : index
    %c0_202 = arith.constant 0 : index
    %286 = vector.load %arg3[%c3_201, %c0_202] : memref<4x28xf32, #tpu.memory_space<vmem>>, vector<1x28xf32>
    %287 = vector.broadcast %286 : vector<1x28xf32> to vector<16x28xf32>
    %288 = arith.addf %285, %287 : vector<16x28xf32>
    %c0_203 = arith.constant 0 : index
    %c3_204 = arith.constant 3 : index
    %c0_205 = arith.constant 0 : index
    %c0_206 = arith.constant 0 : index
    %289 = vector.load %arg4[%c0_203, %c3_204, %c0_205, %c0_206] : memref<1x4x16x28xf32, #tpu.memory_space<vmem>>, vector<1x1x16x28xf32>
    %290 = vector.shape_cast %289 : vector<1x1x16x28xf32> to vector<16x28xf32>
    %291 = vector.shape_cast %288 : vector<16x28xf32> to vector<1x1x16x28xf32>
    tpu.vector_store %arg4[%c0_203, %c3_204, %c0_205, %c0_206], %291 {strides = array<i32>} : memref<1x4x16x28xf32, #tpu.memory_space<vmem>>, vector<1x1x16x28xf32>,
    return
  }
  func.func @transform_0(%arg0: i32) -> (i32, i32, i32, i32) {
    %c0_i32 = arith.constant 0 : i32
    %c0_i32_0 = arith.constant 0 : i32
    %c0_i32_1 = arith.constant 0 : i32
    %c0_i32_2 = arith.constant 0 : i32
    return %arg0, %c0_i32, %c0_i32_0, %c0_i32_1 : i32, i32, i32, i32
  }
  func.func @transform_1(%arg0: i32) -> (i32, i32, i32) {
    %c0_i32 = arith.constant 0 : i32
    %c0_i32_0 = arith.constant 0 : i32
    %c0_i32_1 = arith.constant 0 : i32
    %c0_i32_2 = arith.constant 0 : i32
    return %c0_i32, %c0_i32_0, %c0_i32_1 : i32, i32, i32
  }
  func.func @transform_2(%arg0: i32) -> (i32, i32) {
    %c0_i32 = arith.constant 0 : i32
    %c0_i32_0 = arith.constant 0 : i32
    %c0_i32_1 = arith.constant 0 : i32
    return %c0_i32, %c0_i32_0 : i32, i32
  }
  func.func @transform_3(%arg0: i32) -> (i32, i32, i32, i32) {
    %c0_i32 = arith.constant 0 : i32
    %c0_i32_0 = arith.constant 0 : i32
    %c0_i32_1 = arith.constant 0 : i32
    %c0_i32_2 = arith.constant 0 : i32
    return %arg0, %c0_i32, %c0_i32_0, %c0_i32_1 : i32, i32, i32, i32
  }
}

</mosaic_0001>

<llo_original>
// kernel: tpu_custom_call.1
$region0: #{tpu_custom_call.1}
  #allocation0 [shape = 'u32[]', space=smem, size = 0x4, offset = 0x4, fixed_abs, tag = 'smem constant byte address 0x4 - core index']
  #allocation1 [shape = 'u32[72,128]{1,0:T(1,128)}', space=vmem, size = 0x9000, scoped, tag = 'internal scratch']
  %s0 = inlined_call_operand.hbm [shape: f32[2,4,16,32], index: 0, kind: input, shape index: {}]
  %s1 = inlined_call_operand.vmem [shape: f32[4,12,28], index: 1, kind: input, shape index: {}]
  %s2 = inlined_call_operand.vmem [shape: f32[4,28], index: 2, kind: input, shape index: {}]
  %s3 = inlined_call_operand.hbm [shape: f32[2,4,16,28], index: 3, kind: output, shape index: {}]
  %s4 = sld [smem:[#allocation0]]
  $region49: #{tpu_custom_call.1} parent=0
    _
  %s6 = ssub.s32 1, %s4
  %s7 = scalar_select 0, %s6, %s4
  $region1: #{tpu_custom_call.1} parent=0
    #allocation2 [shape = 'u8[65536]{0}', space=vmem, size = 0x10000, scoped, tag = 'input window, operand 0']
    #allocation3 [shape = 's32[2]{0}', space=sflag, size = 0x8, scoped, tag = 'scoped memory for tpu_custom_call.1']
    #allocation4 [shape = 's32[2]{0}', space=sflag, size = 0x8, scoped, tag = 'scoped memory for tpu_custom_call.1']
    #allocation5 [shape = 'u8[65536]{0}', space=vmem, size = 0x10000, scoped, tag = 'output window, operand 0']
    %8 = vsyncpa [#allocation3], 0
    %s9 = scalar_lea.sflag [#allocation3], 1
    %10 = vsyncpa %s9, 0
    %11 = vsyncpa [#allocation4], 0
    %s12 = scalar_lea.sflag [#allocation4], 1
    %13 = vsyncpa %s12, 0
    loop: start=0, step=1, limit=4
    $region2: #{tpu_custom_call.1} parent=1 // loop_pre_header
      _
    $region3: #{tpu_custom_call.1} parent=1 // loop_header
      %s15 = sphi 0, %s19
      %p16 = scmp.ge.s32.totalorder %s15, 4
      %s25 = sphi 0, %s27
      %s28 = sphi 0, %s25
      %s29 = sphi 0, %s28
      %s45 = sphi 0, %s29
      %s49 = sphi 0, %s49
      %s51 = sphi 0, %s49
      %s52 = sphi 0, %s51
      %s66 = sphi 0, %s52
      %s70 = sphi 0, %s70
      %s72 = sphi 0, %s70
      %s73 = sphi 0, %s72
      %s87 = sphi 0, %s73
      %s93 = sphi 0, %s95
      %s96 = sphi 0, %s93
      %s97 = sphi 0, %s96
      %s113 = sphi 0, %s97
    $region4: #{tpu_custom_call.1} parent=1 // loop_header_branch
      %18 = sbr.rel (%p16) target = $region8
    $region5: #{tpu_custom_call.1} parent=1 // loop_body
      %s20 = ssub.s32 %s15, 1
      %s21 = ssub.s32 %s15, 2
      %s22 = sadd.s32 %s15, 1
      %s23 = ssub.s32 %s15, %s22
      %p24 = scmp.eq.s32.totalorder %s23, 0
      %s26 = sadd.s32 %s25, 1
      %s27 = scalar_select %p24, %s25, %s26
      %p30 = pneg %p24
      %p31 = scmp.eq.s32.totalorder %s15, 1
      %p32 = por %p30, %p31
      %p33 = scmp.ne.s32.totalorder %s25, %s28
      %p34 = scmp.eq.s32.totalorder %s15, 0
      %p35 = por %p33, %p34
      %p36 = scmp.ne.s32.totalorder %s25, %s28
      %p37 = scmp.eq.s32.totalorder %s20, 1
      %p38 = por %p36, %p37
      %p39 = scmp.ne.s32.totalorder %s28, %s29
      %p40 = scmp.eq.s32.totalorder %s20, 0
      %p41 = por %p39, %p40
      %p42 = scmp.ne.s32.totalorder %s28, %s29
      %p43 = scmp.eq.s32.totalorder %s21, 1
      %p44 = por %p42, %p43
      %p46 = scmp.ne.s32.totalorder %s29, %s45
      %p47 = scmp.eq.s32.totalorder %s21, 0
      %p48 = por %p46, %p47
      %s50 = sadd.s32 %s49, 1
      %p53 = scmp.eq.s32.totalorder %s15, 1
      %p54 = scmp.ne.s32.totalorder %s49, %s51
      %p55 = scmp.eq.s32.totalorder %s15, 0
      %p56 = por %p54, %p55
      %p57 = scmp.ne.s32.totalorder %s49, %s51
      %p58 = scmp.eq.s32.totalorder %s20, 1
      %p59 = por %p57, %p58
      %p60 = scmp.ne.s32.totalorder %s51, %s52
      %p61 = scmp.eq.s32.totalorder %s20, 0
      %p62 = por %p60, %p61
      %p63 = scmp.ne.s32.totalorder %s51, %s52
      %p64 = scmp.eq.s32.totalorder %s21, 1
      %p65 = por %p63, %p64
      %p67 = scmp.ne.s32.totalorder %s52, %s66
      %p68 = scmp.eq.s32.totalorder %s21, 0
      %p69 = por %p67, %p68
      %s71 = sadd.s32 %s70, 1
      %p74 = scmp.eq.s32.totalorder %s15, 1
      %p75 = scmp.ne.s32.totalorder %s70, %s72
      %p76 = scmp.eq.s32.totalorder %s15, 0
      %p77 = por %p75, %p76
      %p78 = scmp.ne.s32.totalorder %s70, %s72
      %p79 = scmp.eq.s32.totalorder %s20, 1
      %p80 = por %p78, %p79
      %p81 = scmp.ne.s32.totalorder %s72, %s73
      %p82 = scmp.eq.s32.totalorder %s20, 0
      %p83 = por %p81, %p82
      %p84 = scmp.ne.s32.totalorder %s72, %s73
      %p85 = scmp.eq.s32.totalorder %s21, 1
      %p86 = por %p84, %p85
      %p88 = scmp.ne.s32.totalorder %s73, %s87
      %p89 = scmp.eq.s32.totalorder %s21, 0
      %p90 = por %p88, %p89
      %s91 = ssub.s32 %s15, %s22
      %p92 = scmp.eq.s32.totalorder %s91, 0
      %s94 = sadd.s32 %s93, 1
      %s95 = scalar_select %p92, %s93, %s94
      %p98 = pneg %p92
      %p99 = scmp.eq.s32.totalorder %s15, 1
      %p100 = por %p98, %p99
      %p101 = scmp.ne.s32.totalorder %s93, %s96
      %p102 = scmp.eq.s32.totalorder %s15, 0
      %p103 = por %p101, %p102
      %p104 = scmp.ne.s32.totalorder %s93, %s96
      %p105 = scmp.eq.s32.totalorder %s20, 1
      %p106 = por %p104, %p105
      %p107 = scmp.ne.s32.totalorder %s96, %s97
      %p108 = scmp.eq.s32.totalorder %s20, 0
      %p109 = por %p107, %p108
      %p110 = scmp.ne.s32.totalorder %s96, %s97
      %p111 = scmp.eq.s32.totalorder %s21, 1
      %p112 = por %p110, %p111
      %p114 = scmp.ne.s32.totalorder %s97, %s113
      %p115 = scmp.eq.s32.totalorder %s21, 0
      %p116 = por %p114, %p115
      %p117 = scmp.le.s32.totalorder 1, %s15
      %p118 = scmp.lt.s32.totalorder %s15, 3
      %p119 = pnand %p117, %p118
      %p120 = pneg %p119
      // Predicated region
      $region9: #{tpu_custom_call.1} parent=5 // pred_check
        _
      $region10: #{tpu_custom_call.1} parent=5 // pred_check_branch
        %122 = sbr.rel (%p119) target = $region12
      $region11: #{tpu_custom_call.1} parent=5 // pred_region
        %s123 = ssub.s32 %s15, 1
        // Predicated region
        $region13: #{tpu_custom_call.1} parent=11 // pred_check
          %p124 = pneg %p62
        $region14: #{tpu_custom_call.1} parent=11 // pred_check_branch
          %126 = sbr.rel (%p124) target = $region16
        $region15: #{tpu_custom_call.1} parent=11 // pred_region
          _
        $region16: #{tpu_custom_call.1} parent=11 // pred_fallthru
          _
        // Predicated region
        $region17: #{tpu_custom_call.1} parent=11 // pred_check
          %p127 = pneg %p83
        $region18: #{tpu_custom_call.1} parent=11 // pred_check_branch
          %129 = sbr.rel (%p127) target = $region20
        $region19: #{tpu_custom_call.1} parent=11 // pred_region
          _
        $region20: #{tpu_custom_call.1} parent=11 // pred_fallthru
          _
      $region12: #{tpu_custom_call.1} parent=5 // pred_fallthru
        _
      %p130 = scmp.lt.s32.totalorder %s15, 2
      // Predicated region
      $region21: #{tpu_custom_call.1} parent=5 // pred_check
        %p131 = pneg %p130
      $region22: #{tpu_custom_call.1} parent=5 // pred_check_branch
        %133 = sbr.rel (%p131) target = $region24
      $region23: #{tpu_custom_call.1} parent=5 // pred_region
        // Predicated region
        $region25: #{tpu_custom_call.1} parent=23 // pred_check
          %p134 = pneg %p35
        $region26: #{tpu_custom_call.1} parent=23 // pred_check_branch
          %136 = sbr.rel (%p134) target = $region28
        $region27: #{tpu_custom_call.1} parent=23 // pred_region
          %s137 = sand.u32 %s25, 1
          %s138 = scalar_lea.sflag [#allocation3], %s137
          %s139 = sand.u32 %s25, 1
          %s140 = smul.addr %s139, 64
          %s141 = scalar_lea.vmem [#allocation2], %s140
          %143 = vsyncadd %s138, 0
          %s144 = smul.addr %s15, 8
          %s145 = smul.addr %s144, 8
          %s146 = scalar_lea.hbm %s0, %s145
          %s147 = sshll.u32 %s146, 4
          %s148 = int_to_ptr.hbm [resolvable:$true] %s147
          %s149 = sshll.u32 %s141, 4
          %s150 = int_to_ptr.vmem [resolvable:$true] %s149
          %155 = dma.hbm_to_vmem [thread:$0]  %s148, 1024, %s150, %s138, 128, 128, 8
        $region28: #{tpu_custom_call.1} parent=23 // pred_fallthru
          _
      $region24: #{tpu_custom_call.1} parent=5 // pred_fallthru
        _
      %p156 = scmp.le.s32.totalorder 1, %s15
      %p157 = scmp.lt.s32.totalorder %s15, 3
      %p158 = pnand %p156, %p157
      %p159 = pneg %p158
      // Predicated region
      $region29: #{tpu_custom_call.1} parent=5 // pred_check
        _
      $region30: #{tpu_custom_call.1} parent=5 // pred_check_branch
        %161 = sbr.rel (%p158) target = $region32
      $region31: #{tpu_custom_call.1} parent=5 // pred_region
        %s162 = ssub.s32 %s15, 1
        %s163 = sand.u32 %s28, 1
        %s164 = scalar_lea.sflag [#allocation3], %s163
        %s165 = sand.u32 %s28, 1
        %s166 = smul.addr %s165, 64
        %s167 = scalar_lea.vmem [#allocation2], %s166
        // Predicated region
        $region33: #{tpu_custom_call.1} parent=31 // pred_check
          %p168 = pneg %p41
        $region34: #{tpu_custom_call.1} parent=31 // pred_check_branch
          %170 = sbr.rel (%p168) target = $region36
        $region35: #{tpu_custom_call.1} parent=31 // pred_region
          %172 = dma.done %s164, 1024
        $region36: #{tpu_custom_call.1} parent=31 // pred_fallthru
          _
        %s173 = sand.u32 %s28, 1
        %s174 = scalar_lea.sflag [#allocation3], %s173
        %s175 = sand.u32 %s28, 1
        %s176 = smul.addr %s175, 64
        %s177 = scalar_lea.vmem [#allocation2], %s176
        %p178 = pneg %p41
        %p179 = pneg %p38
        %p180 = pneg %p62
        %p181 = pneg %p59
        %p182 = pneg %p83
        %p183 = pneg %p80
        %p184 = pneg %p109
        %p185 = pneg %p106
        %s186 = sand.u32 %s96, 1
        %s187 = scalar_lea.sflag [#allocation4], %s186
        %s188 = sand.u32 %s96, 1
        %s189 = smul.addr %s188, 64
        %s190 = scalar_lea.vmem [#allocation5], %s189
        %v191 = vld [vmem:[%s167] sm:$0xff]
        %v192 = vld [vmem:[%s167 + $0x8] sm:$0xff]
        %s193 = scalar_lea.vmem %s167, 16 [#allocation2]
        %v194 = vld [vmem:[%s193] sm:$0xff]
        %v195 = vld [vmem:[%s193 + $0x8] sm:$0xff]
        %s196 = scalar_lea.vmem %s167, 32 [#allocation2]
        %v197 = vld [vmem:[%s196] sm:$0xff]
        %v198 = vld [vmem:[%s196 + $0x8] sm:$0xff]
        %s199 = scalar_lea.vmem %s167, 48 [#allocation2]
        %v200 = vld [vmem:[%s199] sm:$0xff]
        %v201 = vld [vmem:[%s199 + $0x8] sm:$0xff]
        %v202 = vld [vmem:[%s1] sm:$0x1]
        %v203 = vperm.slane %v202, 0
        %v204 = vmul.f32 %v191, %v203
        %v205 = vmul.f32 %v192, %v203
        %v206 = vadd.f32 %v204, 0.0
        %v207 = vadd.f32 %v205, 0.0
        %v208 = vld [vmem:[%s1 + $0x1] sm:$0x1]
        %v209 = vperm.slane %v208, 0
        %211 = vrot.lane.b32.xlu0 %v209, 2
        %v212 = vpop.permute.xlu0 %211
        %v214 = vmul.f32 %v191, %v212
        %v215 = vmul.f32 %v192, %v212
        %218 = vrot.lane.b32.xlu0 %v214, 126
        %v219 = vpop.permute.xlu0 %218
        %220 = vrot.lane.b32.xlu0 %v215, 126
        %v221 = vpop.permute.xlu0 %220
        %v224 = vadd.f32 %v206, %v219
        %v225 = vadd.f32 %v207, %v221
        %v226 = vld [vmem:[%s1 + $0x2] sm:$0x1]
        %v227 = vperm.slane %v226, 0
        %229 = vrot.lane.b32.xlu0 %v227, 4
        %v230 = vpop.permute.xlu0 %229
        %v232 = vmul.f32 %v191, %v230
        %v233 = vmul.f32 %v192, %v230
        %236 = vrot.lane.b32.xlu0 %v232, 124
        %v237 = vpop.permute.xlu0 %236
        %238 = vrot.lane.b32.xlu0 %v233, 124
        %v239 = vpop.permute.xlu0 %238
        %v242 = vadd.f32 %v224, %v237
        %v243 = vadd.f32 %v225, %v239
        %v244 = vld [vmem:[%s1 + $0x3] sm:$0x1]
        %v245 = vperm.slane %v244, 0
        %v246 = vmul.f32 %v194, %v245
        %v247 = vmul.f32 %v195, %v245
        %v248 = vadd.f32 %v242, %v246
        %v249 = vadd.f32 %v243, %v247
        %v250 = vld [vmem:[%s1 + $0x4] sm:$0x1]
        %v251 = vperm.slane %v250, 0
        %253 = vrot.lane.b32.xlu0 %v251, 2
        %v254 = vpop.permute.xlu0 %253
        %v256 = vmul.f32 %v194, %v254
        %v257 = vmul.f32 %v195, %v254
        %260 = vrot.lane.b32.xlu0 %v256, 126
        %v261 = vpop.permute.xlu0 %260
        %262 = vrot.lane.b32.xlu0 %v257, 126
        %v263 = vpop.permute.xlu0 %262
        %v266 = vadd.f32 %v248, %v261
        %v267 = vadd.f32 %v249, %v263
        %v268 = vld [vmem:[%s1 + $0x5] sm:$0x1]
        %v269 = vperm.slane %v268, 0
        %271 = vrot.lane.b32.xlu0 %v269, 4
        %v272 = vpop.permute.xlu0 %271
        %v274 = vmul.f32 %v194, %v272
        %v275 = vmul.f32 %v195, %v272
        %278 = vrot.lane.b32.xlu0 %v274, 124
        %v279 = vpop.permute.xlu0 %278
        %280 = vrot.lane.b32.xlu0 %v275, 124
        %v281 = vpop.permute.xlu0 %280
        %v284 = vadd.f32 %v266, %v279
        %v285 = vadd.f32 %v267, %v281
        %v286 = vld [vmem:[%s1 + $0x6] sm:$0x1]
        %v287 = vperm.slane %v286, 0
        %v288 = vmul.f32 %v197, %v287
        %v289 = vmul.f32 %v198, %v287
        %v290 = vadd.f32 %v284, %v288
        %v291 = vadd.f32 %v285, %v289
        %v292 = vld [vmem:[%s1 + $0x7] sm:$0x1]
        %v293 = vperm.slane %v292, 0
        %295 = vrot.lane.b32.xlu0 %v293, 2
        %v296 = vpop.permute.xlu0 %295
        %v298 = vmul.f32 %v197, %v296
        %v299 = vmul.f32 %v198, %v296
        %302 = vrot.lane.b32.xlu0 %v298, 126
        %v303 = vpop.permute.xlu0 %302
        %304 = vrot.lane.b32.xlu0 %v299, 126
        %v305 = vpop.permute.xlu0 %304
        %v308 = vadd.f32 %v290, %v303
        %v309 = vadd.f32 %v291, %v305
        %v310 = vld [vmem:[%s1 + $0x8] sm:$0x1]
        %v311 = vperm.slane %v310, 0
        %313 = vrot.lane.b32.xlu0 %v311, 4
        %v314 = vpop.permute.xlu0 %313
        %v316 = vmul.f32 %v197, %v314
        %v317 = vmul.f32 %v198, %v314
        %320 = vrot.lane.b32.xlu0 %v316, 124
        %v321 = vpop.permute.xlu0 %320
        %322 = vrot.lane.b32.xlu0 %v317, 124
        %v323 = vpop.permute.xlu0 %322
        %v326 = vadd.f32 %v308, %v321
        %v327 = vadd.f32 %v309, %v323
        %v328 = vld [vmem:[%s1 + $0x9] sm:$0x1]
        %v329 = vperm.slane %v328, 0
        %v330 = vmul.f32 %v200, %v329
        %v331 = vmul.f32 %v201, %v329
        %v332 = vadd.f32 %v326, %v330
        %v333 = vadd.f32 %v327, %v331
        %v334 = vld [vmem:[%s1 + $0xa] sm:$0x1]
        %v335 = vperm.slane %v334, 0
        %337 = vrot.lane.b32.xlu0 %v335, 2
        %v338 = vpop.permute.xlu0 %337
        %v340 = vmul.f32 %v200, %v338
        %v341 = vmul.f32 %v201, %v338
        %344 = vrot.lane.b32.xlu0 %v340, 126
        %v345 = vpop.permute.xlu0 %344
        %346 = vrot.lane.b32.xlu0 %v341, 126
        %v347 = vpop.permute.xlu0 %346
        %v350 = vadd.f32 %v332, %v345
        %v351 = vadd.f32 %v333, %v347
        %v352 = vld [vmem:[%s1 + $0xb] sm:$0x1]
        %v353 = vperm.slane %v352, 0
        %355 = vrot.lane.b32.xlu0 %v353, 4
        %v356 = vpop.permute.xlu0 %355
        %v358 = vmul.f32 %v200, %v356
        %v359 = vmul.f32 %v201, %v356
        %362 = vrot.lane.b32.xlu0 %v358, 124
        %v363 = vpop.permute.xlu0 %362
        %364 = vrot.lane.b32.xlu0 %v359, 124
        %v365 = vpop.permute.xlu0 %364
        %v368 = vadd.f32 %v350, %v363
        %v369 = vadd.f32 %v351, %v365
        %v370 = vld [vmem:[%s2] sm:$0x1]
        %v371 = vperm.slane %v370, 0
        %v372 = vadd.f32 %v368, %v371
        %v373 = vadd.f32 %v369, %v371
        %vm374 = vcmask 228352
        %375 = vst.msk [vmem:[%s190] sm:$0xff] %vm374, %v372
        %376 = vst.msk [vmem:[%s190 + $0x8] sm:$0xff] %vm374, %v373
        %s377 = scalar_lea.vmem %s1, 16
        %v378 = vld [vmem:[%s377] sm:$0x1]
        %v379 = vperm.slane %v378, 0
        %v380 = vmul.f32 %v191, %v379
        %v381 = vmul.f32 %v192, %v379
        %v382 = vadd.f32 %v380, 0.0
        %v383 = vadd.f32 %v381, 0.0
        %v384 = vld [vmem:[%s377 + $0x1] sm:$0x1]
        %v385 = vperm.slane %v384, 0
        %387 = vrot.lane.b32.xlu0 %v385, 2
        %v388 = vpop.permute.xlu0 %387
        %v390 = vmul.f32 %v191, %v388
        %v391 = vmul.f32 %v192, %v388
        %394 = vrot.lane.b32.xlu0 %v390, 126
        %v395 = vpop.permute.xlu0 %394
        %396 = vrot.lane.b32.xlu0 %v391, 126
        %v397 = vpop.permute.xlu0 %396
        %v400 = vadd.f32 %v382, %v395
        %v401 = vadd.f32 %v383, %v397
        %v402 = vld [vmem:[%s377 + $0x2] sm:$0x1]
        %v403 = vperm.slane %v402, 0
        %405 = vrot.lane.b32.xlu0 %v403, 4
        %v406 = vpop.permute.xlu0 %405
        %v408 = vmul.f32 %v191, %v406
        %v409 = vmul.f32 %v192, %v406
        %412 = vrot.lane.b32.xlu0 %v408, 124
        %v413 = vpop.permute.xlu0 %412
        %414 = vrot.lane.b32.xlu0 %v409, 124
        %v415 = vpop.permute.xlu0 %414
        %v418 = vadd.f32 %v400, %v413
        %v419 = vadd.f32 %v401, %v415
        %v420 = vld [vmem:[%s377 + $0x3] sm:$0x1]
        %v421 = vperm.slane %v420, 0
        %v422 = vmul.f32 %v194, %v421
        %v423 = vmul.f32 %v195, %v421
        %v424 = vadd.f32 %v418, %v422
        %v425 = vadd.f32 %v419, %v423
        %v426 = vld [vmem:[%s377 + $0x4] sm:$0x1]
        %v427 = vperm.slane %v426, 0
        %429 = vrot.lane.b32.xlu0 %v427, 2
        %v430 = vpop.permute.xlu0 %429
        %v432 = vmul.f32 %v194, %v430
        %v433 = vmul.f32 %v195, %v430
        %436 = vrot.lane.b32.xlu0 %v432, 126
        %v437 = vpop.permute.xlu0 %436
        %438 = vrot.lane.b32.xlu0 %v433, 126
        %v439 = vpop.permute.xlu0 %438
        %v442 = vadd.f32 %v424, %v437
        %v443 = vadd.f32 %v425, %v439
        %v444 = vld [vmem:[%s377 + $0x5] sm:$0x1]
        %v445 = vperm.slane %v444, 0
        %447 = vrot.lane.b32.xlu0 %v445, 4
        %v448 = vpop.permute.xlu0 %447
        %v450 = vmul.f32 %v194, %v448
        %v451 = vmul.f32 %v195, %v448
        %454 = vrot.lane.b32.xlu0 %v450, 124
        %v455 = vpop.permute.xlu0 %454
        %456 = vrot.lane.b32.xlu0 %v451, 124
        %v457 = vpop.permute.xlu0 %456
        %v460 = vadd.f32 %v442, %v455
        %v461 = vadd.f32 %v443, %v457
        %v462 = vld [vmem:[%s377 + $0x6] sm:$0x1]
        %v463 = vperm.slane %v462, 0
        %v464 = vmul.f32 %v197, %v463
        %v465 = vmul.f32 %v198, %v463
        %v466 = vadd.f32 %v460, %v464
        %v467 = vadd.f32 %v461, %v465
        %v468 = vld [vmem:[%s377 + $0x7] sm:$0x1]
        %v469 = vperm.slane %v468, 0
        %471 = vrot.lane.b32.xlu0 %v469, 2
        %v472 = vpop.permute.xlu0 %471
        %v474 = vmul.f32 %v197, %v472
        %v475 = vmul.f32 %v198, %v472
        %478 = vrot.lane.b32.xlu0 %v474, 126
        %v479 = vpop.permute.xlu0 %478
        %480 = vrot.lane.b32.xlu0 %v475, 126
        %v481 = vpop.permute.xlu0 %480
        %v484 = vadd.f32 %v466, %v479
        %v485 = vadd.f32 %v467, %v481
        %v486 = vld [vmem:[%s377 + $0x8] sm:$0x1]
        %v487 = vperm.slane %v486, 0
        %489 = vrot.lane.b32.xlu0 %v487, 4
        %v490 = vpop.permute.xlu0 %489
        %v492 = vmul.f32 %v197, %v490
        %v493 = vmul.f32 %v198, %v490
        %496 = vrot.lane.b32.xlu0 %v492, 124
        %v497 = vpop.permute.xlu0 %496
        %498 = vrot.lane.b32.xlu0 %v493, 124
        %v499 = vpop.permute.xlu0 %498
        %v502 = vadd.f32 %v484, %v497
        %v503 = vadd.f32 %v485, %v499
        %v504 = vld [vmem:[%s377 + $0x9] sm:$0x1]
        %v505 = vperm.slane %v504, 0
        %v506 = vmul.f32 %v200, %v505
        %v507 = vmul.f32 %v201, %v505
        %v508 = vadd.f32 %v502, %v506
        %v509 = vadd.f32 %v503, %v507
        %v510 = vld [vmem:[%s377 + $0xa] sm:$0x1]
        %v511 = vperm.slane %v510, 0
        %513 = vrot.lane.b32.xlu0 %v511, 2
        %v514 = vpop.permute.xlu0 %513
        %v516 = vmul.f32 %v200, %v514
        %v517 = vmul.f32 %v201, %v514
        %520 = vrot.lane.b32.xlu0 %v516, 126
        %v521 = vpop.permute.xlu0 %520
        %522 = vrot.lane.b32.xlu0 %v517, 126
        %v523 = vpop.permute.xlu0 %522
        %v526 = vadd.f32 %v508, %v521
        %v527 = vadd.f32 %v509, %v523
        %v528 = vld [vmem:[%s377 + $0xb] sm:$0x1]
        %v529 = vperm.slane %v528, 0
        %531 = vrot.lane.b32.xlu0 %v529, 4
        %v532 = vpop.permute.xlu0 %531
        %v534 = vmul.f32 %v200, %v532
        %v535 = vmul.f32 %v201, %v532
        %538 = vrot.lane.b32.xlu0 %v534, 124
        %v539 = vpop.permute.xlu0 %538
        %540 = vrot.lane.b32.xlu0 %v535, 124
        %v541 = vpop.permute.xlu0 %540
        %v544 = vadd.f32 %v526, %v539
        %v545 = vadd.f32 %v527, %v541
        %v546 = vld [vmem:[%s2 + $0x1] sm:$0x1]
        %v547 = vperm.slane %v546, 0
        %v548 = vadd.f32 %v544, %v547
        %v549 = vadd.f32 %v545, %v547
        %s550 = scalar_lea.vmem %s190, 16 [#allocation5]
        %551 = vst.msk [vmem:[%s550] sm:$0xff] %vm374, %v548
        %552 = vst.msk [vmem:[%s550 + $0x8] sm:$0xff] %vm374, %v549
        %s553 = scalar_lea.vmem %s1, 32
        %v554 = vld [vmem:[%s553] sm:$0x1]
        %v555 = vperm.slane %v554, 0
        %v556 = vmul.f32 %v191, %v555
        %v557 = vmul.f32 %v192, %v555
        %v558 = vadd.f32 %v556, 0.0
        %v559 = vadd.f32 %v557, 0.0
        %v560 = vld [vmem:[%s553 + $0x1] sm:$0x1]
        %v561 = vperm.slane %v560, 0
        %563 = vrot.lane.b32.xlu0 %v561, 2
        %v564 = vpop.permute.xlu0 %563
        %v566 = vmul.f32 %v191, %v564
        %v567 = vmul.f32 %v192, %v564
        %570 = vrot.lane.b32.xlu0 %v566, 126
        %v571 = vpop.permute.xlu0 %570
        %572 = vrot.lane.b32.xlu0 %v567, 126
        %v573 = vpop.permute.xlu0 %572
        %v576 = vadd.f32 %v558, %v571
        %v577 = vadd.f32 %v559, %v573
        %v578 = vld [vmem:[%s553 + $0x2] sm:$0x1]
        %v579 = vperm.slane %v578, 0
        %581 = vrot.lane.b32.xlu0 %v579, 4
        %v582 = vpop.permute.xlu0 %581
        %v584 = vmul.f32 %v191, %v582
        %v585 = vmul.f32 %v192, %v582
        %588 = vrot.lane.b32.xlu0 %v584, 124
        %v589 = vpop.permute.xlu0 %588
        %590 = vrot.lane.b32.xlu0 %v585, 124
        %v591 = vpop.permute.xlu0 %590
        %v594 = vadd.f32 %v576, %v589
        %v595 = vadd.f32 %v577, %v591
        %v596 = vld [vmem:[%s553 + $0x3] sm:$0x1]
        %v597 = vperm.slane %v596, 0
        %v598 = vmul.f32 %v194, %v597
        %v599 = vmul.f32 %v195, %v597
        %v600 = vadd.f32 %v594, %v598
        %v601 = vadd.f32 %v595, %v599
        %v602 = vld [vmem:[%s553 + $0x4] sm:$0x1]
        %v603 = vperm.slane %v602, 0
        %605 = vrot.lane.b32.xlu0 %v603, 2
        %v606 = vpop.permute.xlu0 %605
        %v608 = vmul.f32 %v194, %v606
        %v609 = vmul.f32 %v195, %v606
        %612 = vrot.lane.b32.xlu0 %v608, 126
        %v613 = vpop.permute.xlu0 %612
        %614 = vrot.lane.b32.xlu0 %v609, 126
        %v615 = vpop.permute.xlu0 %614
        %v618 = vadd.f32 %v600, %v613
        %v619 = vadd.f32 %v601, %v615
        %v620 = vld [vmem:[%s553 + $0x5] sm:$0x1]
        %v621 = vperm.slane %v620, 0
        %623 = vrot.lane.b32.xlu0 %v621, 4
        %v624 = vpop.permute.xlu0 %623
        %v626 = vmul.f32 %v194, %v624
        %v627 = vmul.f32 %v195, %v624
        %630 = vrot.lane.b32.xlu0 %v626, 124
        %v631 = vpop.permute.xlu0 %630
        %632 = vrot.lane.b32.xlu0 %v627, 124
        %v633 = vpop.permute.xlu0 %632
        %v636 = vadd.f32 %v618, %v631
        %v637 = vadd.f32 %v619, %v633
        %v638 = vld [vmem:[%s553 + $0x6] sm:$0x1]
        %v639 = vperm.slane %v638, 0
        %v640 = vmul.f32 %v197, %v639
        %v641 = vmul.f32 %v198, %v639
        %v642 = vadd.f32 %v636, %v640
        %v643 = vadd.f32 %v637, %v641
        %v644 = vld [vmem:[%s553 + $0x7] sm:$0x1]
        %v645 = vperm.slane %v644, 0
        %647 = vrot.lane.b32.xlu0 %v645, 2
        %v648 = vpop.permute.xlu0 %647
        %v650 = vmul.f32 %v197, %v648
        %v651 = vmul.f32 %v198, %v648
        %654 = vrot.lane.b32.xlu0 %v650, 126
        %v655 = vpop.permute.xlu0 %654
        %656 = vrot.lane.b32.xlu0 %v651, 126
        %v657 = vpop.permute.xlu0 %656
        %v660 = vadd.f32 %v642, %v655
        %v661 = vadd.f32 %v643, %v657
        %v662 = vld [vmem:[%s553 + $0x8] sm:$0x1]
        %v663 = vperm.slane %v662, 0
        %665 = vrot.lane.b32.xlu0 %v663, 4
        %v666 = vpop.permute.xlu0 %665
        %v668 = vmul.f32 %v197, %v666
        %v669 = vmul.f32 %v198, %v666
        %672 = vrot.lane.b32.xlu0 %v668, 124
        %v673 = vpop.permute.xlu0 %672
        %674 = vrot.lane.b32.xlu0 %v669, 124
        %v675 = vpop.permute.xlu0 %674
        %v678 = vadd.f32 %v660, %v673
        %v679 = vadd.f32 %v661, %v675
        %v680 = vld [vmem:[%s553 + $0x9] sm:$0x1]
        %v681 = vperm.slane %v680, 0
        %v682 = vmul.f32 %v200, %v681
        %v683 = vmul.f32 %v201, %v681
        %v684 = vadd.f32 %v678, %v682
        %v685 = vadd.f32 %v679, %v683
        %v686 = vld [vmem:[%s553 + $0xa] sm:$0x1]
        %v687 = vperm.slane %v686, 0
        %689 = vrot.lane.b32.xlu0 %v687, 2
        %v690 = vpop.permute.xlu0 %689
        %v692 = vmul.f32 %v200, %v690
        %v693 = vmul.f32 %v201, %v690
        %696 = vrot.lane.b32.xlu0 %v692, 126
        %v697 = vpop.permute.xlu0 %696
        %698 = vrot.lane.b32.xlu0 %v693, 126
        %v699 = vpop.permute.xlu0 %698
        %v702 = vadd.f32 %v684, %v697
        %v703 = vadd.f32 %v685, %v699
        %v704 = vld [vmem:[%s553 + $0xb] sm:$0x1]
        %v705 = vperm.slane %v704, 0
        %707 = vrot.lane.b32.xlu0 %v705, 4
        %v708 = vpop.permute.xlu0 %707
        %v710 = vmul.f32 %v200, %v708
        %v711 = vmul.f32 %v201, %v708
        %714 = vrot.lane.b32.xlu0 %v710, 124
        %v715 = vpop.permute.xlu0 %714
        %716 = vrot.lane.b32.xlu0 %v711, 124
        %v717 = vpop.permute.xlu0 %716
        %v720 = vadd.f32 %v702, %v715
        %v721 = vadd.f32 %v703, %v717
        %v722 = vld [vmem:[%s2 + $0x2] sm:$0x1]
        %v723 = vperm.slane %v722, 0
        %v724 = vadd.f32 %v720, %v723
        %v725 = vadd.f32 %v721, %v723
        %s726 = scalar_lea.vmem %s190, 32 [#allocation5]
        %727 = vst.msk [vmem:[%s726] sm:$0xff] %vm374, %v724
        %728 = vst.msk [vmem:[%s726 + $0x8] sm:$0xff] %vm374, %v725
        %s729 = scalar_lea.vmem %s1, 48
        %v730 = vld [vmem:[%s729] sm:$0x1]
        %v731 = vperm.slane %v730, 0
        %v732 = vmul.f32 %v191, %v731
        %v733 = vmul.f32 %v192, %v731
        %v734 = vadd.f32 %v732, 0.0
        %v735 = vadd.f32 %v733, 0.0
        %v736 = vld [vmem:[%s729 + $0x1] sm:$0x1]
        %v737 = vperm.slane %v736, 0
        %739 = vrot.lane.b32.xlu0 %v737, 2
        %v740 = vpop.permute.xlu0 %739
        %v742 = vmul.f32 %v191, %v740
        %v743 = vmul.f32 %v192, %v740
        %746 = vrot.lane.b32.xlu0 %v742, 126
        %v747 = vpop.permute.xlu0 %746
        %748 = vrot.lane.b32.xlu0 %v743, 126
        %v749 = vpop.permute.xlu0 %748
        %v752 = vadd.f32 %v734, %v747
        %v753 = vadd.f32 %v735, %v749
        %v754 = vld [vmem:[%s729 + $0x2] sm:$0x1]
        %v755 = vperm.slane %v754, 0
        %757 = vrot.lane.b32.xlu0 %v755, 4
        %v758 = vpop.permute.xlu0 %757
        %v760 = vmul.f32 %v191, %v758
        %v761 = vmul.f32 %v192, %v758
        %764 = vrot.lane.b32.xlu0 %v760, 124
        %v765 = vpop.permute.xlu0 %764
        %766 = vrot.lane.b32.xlu0 %v761, 124
        %v767 = vpop.permute.xlu0 %766
        %v770 = vadd.f32 %v752, %v765
        %v771 = vadd.f32 %v753, %v767
        %v772 = vld [vmem:[%s729 + $0x3] sm:$0x1]
        %v773 = vperm.slane %v772, 0
        %v774 = vmul.f32 %v194, %v773
        %v775 = vmul.f32 %v195, %v773
        %v776 = vadd.f32 %v770, %v774
        %v777 = vadd.f32 %v771, %v775
        %v778 = vld [vmem:[%s729 + $0x4] sm:$0x1]
        %v779 = vperm.slane %v778, 0
        %781 = vrot.lane.b32.xlu0 %v779, 2
        %v782 = vpop.permute.xlu0 %781
        %v784 = vmul.f32 %v194, %v782
        %v785 = vmul.f32 %v195, %v782
        %788 = vrot.lane.b32.xlu0 %v784, 126
        %v789 = vpop.permute.xlu0 %788
        %790 = vrot.lane.b32.xlu0 %v785, 126
        %v791 = vpop.permute.xlu0 %790
        %v794 = vadd.f32 %v776, %v789
        %v795 = vadd.f32 %v777, %v791
        %v796 = vld [vmem:[%s729 + $0x5] sm:$0x1]
        %v797 = vperm.slane %v796, 0
        %799 = vrot.lane.b32.xlu0 %v797, 4
        %v800 = vpop.permute.xlu0 %799
        %v802 = vmul.f32 %v194, %v800
        %v803 = vmul.f32 %v195, %v800
        %806 = vrot.lane.b32.xlu0 %v802, 124
        %v807 = vpop.permute.xlu0 %806
        %808 = vrot.lane.b32.xlu0 %v803, 124
        %v809 = vpop.permute.xlu0 %808
        %v812 = vadd.f32 %v794, %v807
        %v813 = vadd.f32 %v795, %v809
        %v814 = vld [vmem:[%s729 + $0x6] sm:$0x1]
        %v815 = vperm.slane %v814, 0
        %v816 = vmul.f32 %v197, %v815
        %v817 = vmul.f32 %v198, %v815
        %v818 = vadd.f32 %v812, %v816
        %v819 = vadd.f32 %v813, %v817
        %v820 = vld [vmem:[%s729 + $0x7] sm:$0x1]
        %v821 = vperm.slane %v820, 0
        %823 = vrot.lane.b32.xlu0 %v821, 2
        %v824 = vpop.permute.xlu0 %823
        %v826 = vmul.f32 %v197, %v824
        %v827 = vmul.f32 %v198, %v824
        %830 = vrot.lane.b32.xlu0 %v826, 126
        %v831 = vpop.permute.xlu0 %830
        %832 = vrot.lane.b32.xlu0 %v827, 126
        %v833 = vpop.permute.xlu0 %832
        %v836 = vadd.f32 %v818, %v831
        %v837 = vadd.f32 %v819, %v833
        %v838 = vld [vmem:[%s729 + $0x8] sm:$0x1]
        %v839 = vperm.slane %v838, 0
        %841 = vrot.lane.b32.xlu0 %v839, 4
        %v842 = vpop.permute.xlu0 %841
        %v844 = vmul.f32 %v197, %v842
        %v845 = vmul.f32 %v198, %v842
        %848 = vrot.lane.b32.xlu0 %v844, 124
        %v849 = vpop.permute.xlu0 %848
        %850 = vrot.lane.b32.xlu0 %v845, 124
        %v851 = vpop.permute.xlu0 %850
        %v854 = vadd.f32 %v836, %v849
        %v855 = vadd.f32 %v837, %v851
        %v856 = vld [vmem:[%s729 + $0x9] sm:$0x1]
        %v857 = vperm.slane %v856, 0
        %v858 = vmul.f32 %v200, %v857
        %v859 = vmul.f32 %v201, %v857
        %v860 = vadd.f32 %v854, %v858
        %v861 = vadd.f32 %v855, %v859
        %v862 = vld [vmem:[%s729 + $0xa] sm:$0x1]
        %v863 = vperm.slane %v862, 0
        %865 = vrot.lane.b32.xlu0 %v863, 2
        %v866 = vpop.permute.xlu0 %865
        %v868 = vmul.f32 %v200, %v866
        %v869 = vmul.f32 %v201, %v866
        %872 = vrot.lane.b32.xlu0 %v868, 126
        %v873 = vpop.permute.xlu0 %872
        %874 = vrot.lane.b32.xlu0 %v869, 126
        %v875 = vpop.permute.xlu0 %874
        %v878 = vadd.f32 %v860, %v873
        %v879 = vadd.f32 %v861, %v875
        %v880 = vld [vmem:[%s729 + $0xb] sm:$0x1]
        %v881 = vperm.slane %v880, 0
        %883 = vrot.lane.b32.xlu0 %v881, 4
        %v884 = vpop.permute.xlu0 %883
        %v886 = vmul.f32 %v200, %v884
        %v887 = vmul.f32 %v201, %v884
        %890 = vrot.lane.b32.xlu0 %v886, 124
        %v891 = vpop.permute.xlu0 %890
        %892 = vrot.lane.b32.xlu0 %v887, 124
        %v893 = vpop.permute.xlu0 %892
        %v896 = vadd.f32 %v878, %v891
        %v897 = vadd.f32 %v879, %v893
        %v898 = vld [vmem:[%s2 + $0x3] sm:$0x1]
        %v899 = vperm.slane %v898, 0
        %v900 = vadd.f32 %v896, %v899
        %v901 = vadd.f32 %v897, %v899
        %s902 = scalar_lea.vmem %s190, 48 [#allocation5]
        %903 = vst.msk [vmem:[%s902] sm:$0xff] %vm374, %v900
        %904 = vst.msk [vmem:[%s902 + $0x8] sm:$0xff] %vm374, %v901
        %s905 = sand.u32 %s96, 1
        %s906 = scalar_lea.sflag [#allocation4], %s905
        %s907 = sand.u32 %s96, 1
        %s908 = smul.addr %s907, 64
        %s909 = scalar_lea.vmem [#allocation5], %s908
        // Predicated region
        $region37: #{tpu_custom_call.1} parent=31 // pred_check
          %p910 = pneg %p106
        $region38: #{tpu_custom_call.1} parent=31 // pred_check_branch
          %912 = sbr.rel (%p910) target = $region40
        $region39: #{tpu_custom_call.1} parent=31 // pred_region
          %914 = vsyncadd %s906, 0
          %s915 = smul.addr %s20, 8
          %s916 = smul.addr %s915, 8
          %s917 = scalar_lea.hbm %s3, %s916
          %s918 = sshll.u32 %s909, 4
          %s919 = int_to_ptr.vmem [resolvable:$true] %s918
          %s920 = sshll.u32 %s917, 4
          %s921 = int_to_ptr.hbm [resolvable:$true] %s920
          %926 = dma.vmem_to_hbm [thread:$0]  %s919, 1024, %s921, %s906, 128, 128, 8
        $region40: #{tpu_custom_call.1} parent=31 // pred_fallthru
          _
      $region32: #{tpu_custom_call.1} parent=5 // pred_fallthru
        _
      %p927 = scmp.le.s32.totalorder 2, %s15
      // Predicated region
      $region41: #{tpu_custom_call.1} parent=5 // pred_check
        %p928 = pneg %p927
      $region42: #{tpu_custom_call.1} parent=5 // pred_check_branch
        %930 = sbr.rel (%p928) target = $region44
      $region43: #{tpu_custom_call.1} parent=5 // pred_region
        %s931 = ssub.s32 %s15, 2
        // Predicated region
        $region45: #{tpu_custom_call.1} parent=43 // pred_check
          %p932 = pneg %p112
        $region46: #{tpu_custom_call.1} parent=43 // pred_check_branch
          %934 = sbr.rel (%p932) target = $region48
        $region47: #{tpu_custom_call.1} parent=43 // pred_region
          %s935 = sand.u32 %s97, 1
          %s936 = scalar_lea.sflag [#allocation4], %s935
          %s937 = sand.u32 %s97, 1
          %s938 = smul.addr %s937, 64
          %s939 = scalar_lea.vmem [#allocation5], %s938
          %941 = dma.done %s936, 1024
        $region48: #{tpu_custom_call.1} parent=43 // pred_fallthru
          _
      $region44: #{tpu_custom_call.1} parent=5 // pred_fallthru
        _
    $region6: #{tpu_custom_call.1} parent=1 // loop_footer
      %s19 = sadd.s32 1, %s15
    $region7: #{tpu_custom_call.1} parent=1 // loop_footer_branch
      %14 = sbr.rel target = $region3
    $region8: #{tpu_custom_call.1} parent=1 // loop_exit
      _
    %942 = vsyncpa [#allocation3], 1
    %s943 = scalar_lea.sflag [#allocation3], 1
    %944 = vsyncpa %s943, 1
    %945 = vsyncpa [#allocation4], 1
    %s946 = scalar_lea.sflag [#allocation4], 1
    %947 = vsyncpa %s946, 1

</llo_original>
